<compile_context>
chip_gen: v5e
topology: v5e:2x2
jax: 0.10.0
libtpu: 0.0.40
codegen_flags: <defaults>
</compile_context>

<pallas_src>
import jax
import jax.numpy as jnp
from jax import lax
from jax.experimental import pallas as pl
from jax.experimental.pallas import tpu as pltpu


def mlp_kernel(x_ref, w1_ref, b1_ref, w2_ref, b2_ref,
               w3_ref, b3_ref, w4_ref, b4_ref, o_ref):
    # Whole MLP forward for one batch tile, entirely in VMEM / on the MXU+VPU.
    # x arrives as f32 and is cast to bf16 in-kernel; weights are bf16;
    # biases, ReLU and all matmul accumulation stay in f32.
    x = x_ref[...].astype(w1_ref.dtype)                              # (tm, 80) -> bf16
    h = jnp.dot(x, w1_ref[...], preferred_element_type=jnp.float32) + b1_ref[...]
    h = jnp.maximum(h, 0.0).astype(w2_ref.dtype)
    h = jnp.dot(h, w2_ref[...], preferred_element_type=jnp.float32) + b2_ref[...]
    h = jnp.maximum(h, 0.0).astype(w3_ref.dtype)
    h = jnp.dot(h, w3_ref[...], preferred_element_type=jnp.float32) + b3_ref[...]
    h = jnp.maximum(h, 0.0).astype(w4_ref.dtype)                     # (tm, 128)
    # Final 128 -> 1 layer as w4 (1,128) contracted with h (tm,128) along the
    # feature axis -> (1, tm).  Lane-dense output tile => unmasked stores.
    o = lax.dot_general(w4_ref[...], h,
                        dimension_numbers=(((1,), (1,)), ((), ())),
                        preferred_element_type=jnp.float32)          # (1, tm)
    o_ref[...] = (o + b4_ref[...]).astype(o_ref.dtype)               # b4: (1,1)


def _choose_tile(B, cap=2048):
    """Batch-tile heuristic (per perf review).

    - Tiny batches: one full-extent tile (no padding, no ragged blocks).
    - Large batches: MXU-aligned tiles (multiple of 256) capped at `cap`,
      sized to give at least 2 grid steps so both v7x TensorCores get work.
    """
    if B <= 512:
        return B
    half = -(-B // 2)                       # ceil(B/2)
    return min(cap, ((half + 255) // 256) * 256)


def mlp_forward(x, params, *, tm=None):
    """x: (B, 80) float32.  params from prepare_params.  Returns (B, 1) float32."""
    (w1, b1), (w2, b2), (w3, b3), (w4, b4) = params
    B, Din = x.shape
    assert Din == 80

    if tm is None:
        tm = _choose_tile(B)
    grid = (pl.cdiv(B, tm),)

    # Weight / bias specs: full-extent blocks with a constant index_map —
    # resident in VMEM for every grid step (no redundant re-DMA).
    def full_spec(shape):
        return pl.BlockSpec(shape, lambda i: (0, 0))

    flops = 2 * B * (80 * 128 + 128 * 256 + 256 * 128 + 128 * 1)
    bytes_accessed = (
        x.size * x.dtype.itemsize
        + sum(a.size * a.dtype.itemsize
              for a in (w1, b1, w2, b2, w3, b3, w4, b4))
        + B * 4  # f32 output
    )

    out = pl.pallas_call(
        mlp_kernel,
        out_shape=jax.ShapeDtypeStruct((1, B), jnp.float32),
        grid_spec=pltpu.PrefetchScalarGridSpec(
            num_scalar_prefetch=0,
            grid=grid,
            in_specs=[
                pl.BlockSpec((tm, 80), lambda i: (i, 0)),   # x batch tile (f32)
                full_spec(w1.shape), full_spec(b1.shape),
                full_spec(w2.shape), full_spec(b2.shape),
                full_spec(w3.shape), full_spec(b3.shape),
                full_spec(w4.shape), full_spec(b4.shape),
            ],
            # Lane-dense output: (1, tm) blocks along the batch (lane) axis.
            out_specs=pl.BlockSpec((1, tm), lambda i: (0, i)),
        ),
        compiler_params=pltpu.CompilerParams(
            dimension_semantics=("parallel",)),
        cost_estimate=pl.CostEstimate(
            flops=flops, transcendentals=0, bytes_accessed=bytes_accessed),
    )(x, w1, b1, w2, b2, w3, b3, w4, b4)

    # (1, B) -> (B, 1) to match the PyTorch module's output layout.
    # (If downstream code can consume (B,) / (1,B), skip this relayout.)
    return out.reshape(B, 1)


def init_params(key):
    """Deterministic synthetic f32 parameters matching nn.Linear shapes.

    PyTorch nn.Linear(in, out) has weight (out, in).  For the first three
    layers we store the transpose (in, out) so the kernel computes x @ W + b
    directly; the last layer's weight stays in PyTorch layout (1, 128) because
    the kernel contracts it against the feature axis of h.
    """
    dims = [(80, 128), (128, 256), (256, 128), (128, 1)]
    params = []
    for idx, (din, dout) in enumerate(dims):
        kw, kb = jax.random.split(jax.random.fold_in(key, idx))
        bound = 1.0 / (din ** 0.5)            # PyTorch default uniform init bound
        if dout == 1:
            w = jax.random.uniform(kw, (dout, din), jnp.float32, -bound, bound)
        else:
            w = jax.random.uniform(kw, (din, dout), jnp.float32, -bound, bound)
        b = jax.random.uniform(kb, (1, dout), jnp.float32, -bound, bound)
        params.append((w, b))
    return params


def prepare_params(params, compute_dtype=jnp.bfloat16):
    """One-time cast of weights to the MXU compute dtype (biases stay f32)."""
    return [(w.astype(compute_dtype), b.astype(jnp.float32)) for (w, b) in params]


def mlp_reference(x, params):
    """Pure-JAX reference using the same bf16-operand / f32-accumulate scheme."""
    (w1, b1), (w2, b2), (w3, b3), (w4, b4) = params
    h = x.astype(w1.dtype)
    for w, b in ((w1, b1), (w2, b2), (w3, b3)):
        h = jnp.dot(h, w, preferred_element_type=jnp.float32) + b
        h = jnp.maximum(h, 0.0).astype(w.dtype)
    o = jnp.dot(h, w4.T, preferred_element_type=jnp.float32) + b4
    return o


if __name__ == "__main__":
    key = jax.random.PRNGKey(0)
    params = prepare_params(init_params(key))
    x = jax.random.normal(jax.random.fold_in(key, 100), (16, 80), jnp.float32)

    out = jax.block_until_ready(mlp_forward(x, params))

    ref = mlp_reference(x, params)
    assert out.shape == (16, 1)
    assert jnp.allclose(out, ref, atol=2e-3, rtol=2e-3)
    print("KERNEL_OK")
</pallas_src>

<mosaic_0001>
module attributes {stable_mosaic.version = 11 : i64} {
  func.func @mlp_kernel(%arg0: i32, %arg1: memref<16x80xf32, #tpu.memory_space<vmem>>, %arg2: memref<80x128xbf16, #tpu.memory_space<vmem>>, %arg3: memref<1x128xf32, #tpu.memory_space<vmem>>, %arg4: memref<128x256xbf16, #tpu.memory_space<vmem>>, %arg5: memref<1x256xf32, #tpu.memory_space<vmem>>, %arg6: memref<256x128xbf16, #tpu.memory_space<vmem>>, %arg7: memref<1x128xf32, #tpu.memory_space<vmem>>, %arg8: memref<1x128xbf16, #tpu.memory_space<vmem>>, %arg9: memref<1x1xf32, #tpu.memory_space<vmem>>, %arg10: memref<1x16xf32, #tpu.memory_space<vmem>>) attributes {dimension_semantics = [#tpu.dimension_semantics<parallel>], iteration_bounds = array<i64: 1>, scalar_prefetch = 0 : i64, scratch_operands = 0 : i64, tpu.core_type = #tpu.core_type<tc>, window_params = [{transform_indices = @transform_0, window_bounds = array<i64: 16, 80>}, {pipeline_mode = #tpu.pipeline_mode<synchronous>, transform_indices = @transform_1, window_bounds = array<i64: 80, 128>}, {pipeline_mode = #tpu.pipeline_mode<synchronous>, transform_indices = @transform_2, window_bounds = array<i64: 1, 128>}, {pipeline_mode = #tpu.pipeline_mode<synchronous>, transform_indices = @transform_3, window_bounds = array<i64: 128, 256>}, {pipeline_mode = #tpu.pipeline_mode<synchronous>, transform_indices = @transform_4, window_bounds = array<i64: 1, 256>}, {pipeline_mode = #tpu.pipeline_mode<synchronous>, transform_indices = @transform_5, window_bounds = array<i64: 256, 128>}, {pipeline_mode = #tpu.pipeline_mode<synchronous>, transform_indices = @transform_6, window_bounds = array<i64: 1, 128>}, {pipeline_mode = #tpu.pipeline_mode<synchronous>, transform_indices = @transform_7, window_bounds = array<i64: 1, 128>}, {pipeline_mode = #tpu.pipeline_mode<synchronous>, transform_indices = @transform_8, window_bounds = array<i64: 1, 1>}, {transform_indices = @transform_9, window_bounds = array<i64: 1, 16>}]} {
    %c0 = arith.constant 0 : index
    %c0_0 = arith.constant 0 : index
    %0 = vector.load %arg1[%c0, %c0_0] : memref<16x80xf32, #tpu.memory_space<vmem>>, vector<16x80xf32>
    %1 = arith.truncf %0 : vector<16x80xf32> to vector<16x80xbf16>
    %c0_1 = arith.constant 0 : index
    %c0_2 = arith.constant 0 : index
    %2 = vector.load %arg2[%c0_1, %c0_2] : memref<80x128xbf16, #tpu.memory_space<vmem>>, vector<80x128xbf16>
    %cst = arith.constant dense<0.000000e+00> : vector<16x128xf32>
    %3 = tpu.matmul %1, %2, %cst {dimension_numbers = #tpu.dot_dimension_numbers<[1], [0], [0], [1], [0, 0, 1, 1], [], []>} : vector<16x80xbf16>, vector<80x128xbf16>, vector<16x128xf32> -> vector<16x128xf32>
    %c0_3 = arith.constant 0 : index
    %c0_4 = arith.constant 0 : index
    %4 = vector.load %arg3[%c0_3, %c0_4] : memref<1x128xf32, #tpu.memory_space<vmem>>, vector<1x128xf32>
    %5 = vector.broadcast %4 : vector<1x128xf32> to vector<16x128xf32>
    %6 = arith.addf %3, %5 : vector<16x128xf32>
    %cst_5 = arith.constant 0.000000e+00 : f32
    %7 = vector.broadcast %cst_5 : f32 to vector<16x128xf32>
    %8 = arith.maximumf %6, %7 : vector<16x128xf32>
    %9 = arith.truncf %8 : vector<16x128xf32> to vector<16x128xbf16>
    %c0_6 = arith.constant 0 : index
    %c0_7 = arith.constant 0 : index
    %10 = vector.load %arg4[%c0_6, %c0_7] : memref<128x256xbf16, #tpu.memory_space<vmem>>, vector<128x256xbf16>
    %cst_8 = arith.constant dense<0.000000e+00> : vector<16x256xf32>
    %11 = tpu.matmul %9, %10, %cst_8 {dimension_numbers = #tpu.dot_dimension_numbers<[1], [0], [0], [1], [0, 0, 1, 1], [], []>} : vector<16x128xbf16>, vector<128x256xbf16>, vector<16x256xf32> -> vector<16x256xf32>
    %c0_9 = arith.constant 0 : index
    %c0_10 = arith.constant 0 : index
    %12 = vector.load %arg5[%c0_9, %c0_10] : memref<1x256xf32, #tpu.memory_space<vmem>>, vector<1x256xf32>
    %13 = vector.broadcast %12 : vector<1x256xf32> to vector<16x256xf32>
    %14 = arith.addf %11, %13 : vector<16x256xf32>
    %cst_11 = arith.constant 0.000000e+00 : f32
    %15 = vector.broadcast %cst_11 : f32 to vector<16x256xf32>
    %16 = arith.maximumf %14, %15 : vector<16x256xf32>
    %17 = arith.truncf %16 : vector<16x256xf32> to vector<16x256xbf16>
    %c0_12 = arith.constant 0 : index
    %c0_13 = arith.constant 0 : index
    %18 = vector.load %arg6[%c0_12, %c0_13] : memref<256x128xbf16, #tpu.memory_space<vmem>>, vector<256x128xbf16>
    %cst_14 = arith.constant dense<0.000000e+00> : vector<16x128xf32>
    %19 = tpu.matmul %17, %18, %cst_14 {dimension_numbers = #tpu.dot_dimension_numbers<[1], [0], [0], [1], [0, 0, 1, 1], [], []>} : vector<16x256xbf16>, vector<256x128xbf16>, vector<16x128xf32> -> vector<16x128xf32>
    %c0_15 = arith.constant 0 : index
    %c0_16 = arith.constant 0 : index
    %20 = vector.load %arg7[%c0_15, %c0_16] : memref<1x128xf32, #tpu.memory_space<vmem>>, vector<1x128xf32>
    %21 = vector.broadcast %20 : vector<1x128xf32> to vector<16x128xf32>
    %22 = arith.addf %19, %21 : vector<16x128xf32>
    %cst_17 = arith.constant 0.000000e+00 : f32
    %23 = vector.broadcast %cst_17 : f32 to vector<16x128xf32>
    %24 = arith.maximumf %22, %23 : vector<16x128xf32>
    %25 = arith.truncf %24 : vector<16x128xf32> to vector<16x128xbf16>
    %c0_18 = arith.constant 0 : index
    %c0_19 = arith.constant 0 : index
    %26 = vector.load %arg8[%c0_18, %c0_19] : memref<1x128xbf16, #tpu.memory_space<vmem>>, vector<1x128xbf16>
    %cst_20 = arith.constant dense<0.000000e+00> : vector<1x16xf32>
    %27 = tpu.matmul %26, %25, %cst_20 {dimension_numbers = #tpu.dot_dimension_numbers<[1], [1], [0], [0], [0, 0, 1, 0], [], []>} : vector<1x128xbf16>, vector<16x128xbf16>, vector<1x16xf32> -> vector<1x16xf32>
    %c0_21 = arith.constant 0 : index
    %c0_22 = arith.constant 0 : index
    %28 = vector.load %arg9[%c0_21, %c0_22] : memref<1x1xf32, #tpu.memory_space<vmem>>, vector<1x1xf32>
    %29 = vector.broadcast %28 : vector<1x1xf32> to vector<1x16xf32>
    %30 = arith.addf %27, %29 : vector<1x16xf32>
    %c0_23 = arith.constant 0 : index
    %c0_24 = arith.constant 0 : index
    %31 = vector.load %arg10[%c0_23, %c0_24] : memref<1x16xf32, #tpu.memory_space<vmem>>, vector<1x16xf32>
    tpu.vector_store %arg10[%c0_23, %c0_24], %30 {strides = array<i32>} : memref<1x16xf32, #tpu.memory_space<vmem>>, vector<1x16xf32>,
    return
  }
  func.func @transform_0(%arg0: i32) -> (i32, i32) {
    %c0_i32 = arith.constant 0 : i32
    %c0_i32_0 = arith.constant 0 : i32
    return %arg0, %c0_i32 : i32, i32
  }
  func.func @transform_1(%arg0: i32) -> (i32, i32) {
    %c0_i32 = arith.constant 0 : i32
    %c0_i32_0 = arith.constant 0 : i32
    %c0_i32_1 = arith.constant 0 : i32
    return %c0_i32, %c0_i32_0 : i32, i32
  }
  func.func @transform_2(%arg0: i32) -> (i32, i32) {
    %c0_i32 = arith.constant 0 : i32
    %c0_i32_0 = arith.constant 0 : i32
    %c0_i32_1 = arith.constant 0 : i32
    return %c0_i32, %c0_i32_0 : i32, i32
  }
  func.func @transform_3(%arg0: i32) -> (i32, i32) {
    %c0_i32 = arith.constant 0 : i32
    %c0_i32_0 = arith.constant 0 : i32
    %c0_i32_1 = arith.constant 0 : i32
    return %c0_i32, %c0_i32_0 : i32, i32
  }
  func.func @transform_4(%arg0: i32) -> (i32, i32) {
    %c0_i32 = arith.constant 0 : i32
    %c0_i32_0 = arith.constant 0 : i32
    %c0_i32_1 = arith.constant 0 : i32
    return %c0_i32, %c0_i32_0 : i32, i32
  }
  func.func @transform_5(%arg0: i32) -> (i32, i32) {
    %c0_i32 = arith.constant 0 : i32
    %c0_i32_0 = arith.constant 0 : i32
    %c0_i32_1 = arith.constant 0 : i32
    return %c0_i32, %c0_i32_0 : i32, i32
  }
  func.func @transform_6(%arg0: i32) -> (i32, i32) {
    %c0_i32 = arith.constant 0 : i32
    %c0_i32_0 = arith.constant 0 : i32
    %c0_i32_1 = arith.constant 0 : i32
    return %c0_i32, %c0_i32_0 : i32, i32
  }
  func.func @transform_7(%arg0: i32) -> (i32, i32) {
    %c0_i32 = arith.constant 0 : i32
    %c0_i32_0 = arith.constant 0 : i32
    %c0_i32_1 = arith.constant 0 : i32
    return %c0_i32, %c0_i32_0 : i32, i32
  }
  func.func @transform_8(%arg0: i32) -> (i32, i32) {
    %c0_i32 = arith.constant 0 : i32
    %c0_i32_0 = arith.constant 0 : i32
    %c0_i32_1 = arith.constant 0 : i32
    return %c0_i32, %c0_i32_0 : i32, i32
  }
  func.func @transform_9(%arg0: i32) -> (i32, i32) {
    %c0_i32 = arith.constant 0 : i32
    %c0_i32_0 = arith.constant 0 : i32
    return %c0_i32, %arg0 : i32, i32
  }
}

</mosaic_0001>

<llo_original>
// kernel: tpu_custom_call.1
$region0: #{tpu_custom_call.1}
  #allocation0 [shape = 'u32[]', space=smem, size = 0x4, offset = 0x4, fixed_abs, tag = 'smem constant byte address 0x4 - core index']
  #allocation1 [shape = 'u32[72,128]{1,0:T(1,128)}', space=vmem, size = 0x9000, scoped, tag = 'internal scratch']
  #allocation2 [shape = 'f32[1,1]{1,0:T(1,128)S(1)}', space=vmem, size = 0x200, scoped, tag = 'scoped memory for tpu_custom_call.1']
  %s0 = inlined_call_operand.hbm [shape: f32[16,80], index: 0, kind: input, shape index: {}]
  %s1 = inlined_call_operand.hbm [shape: bf16[80,128], index: 1, kind: input, shape index: {}]
  %s2 = inlined_call_operand.vmem [shape: f32[1,128], index: 2, kind: input, shape index: {}]
  %s3 = inlined_call_operand.hbm [shape: bf16[128,256], index: 3, kind: input, shape index: {}]
  %s4 = inlined_call_operand.vmem [shape: f32[1,256], index: 4, kind: input, shape index: {}]
  %s5 = inlined_call_operand.hbm [shape: bf16[256,128], index: 5, kind: input, shape index: {}]
  %s6 = inlined_call_operand.vmem [shape: f32[1,128], index: 6, kind: input, shape index: {}]
  %s7 = inlined_call_operand.vmem [shape: bf16[1,128], index: 7, kind: input, shape index: {}]
  %s8 = inlined_call_operand.<no memory space> [shape: f32[1,1], index: 8, kind: input, shape index: {}]
  %s9 = inlined_call_operand.hbm [shape: f32[1,16], index: 9, kind: output, shape index: {}]
  %s10 = sld [smem:[#allocation0]]
  $region62: #{tpu_custom_call.1} parent=0
    _
  %s12 = ssub.s32 1, %s10
  %s13 = scalar_select 0, %s12, %s10
  %v14 = vstv %s8
  %15 = vst [vmem:[#allocation2] sm:$0x1] %v14
  $region1: #{tpu_custom_call.1} parent=0
    #allocation3 [shape = 'u8[8192]{0}', space=vmem, size = 0x2000, scoped, tag = 'input window, operand 0, single buffered']
    #allocation4 [shape = 's32[1]{0}', space=sflag, size = 0x4, scoped, tag = 'scoped memory for tpu_custom_call.1']
    #allocation5 [shape = 's32[1]{0}', space=sflag, size = 0x4, scoped, tag = 'scoped memory for tpu_custom_call.1']
    #allocation6 [shape = 'u8[20480]{0}', space=vmem, size = 0x5000, scoped, tag = 'input window, operand 1, single buffered']
    #allocation7 [shape = 's32[1]{0}', space=sflag, size = 0x4, scoped, tag = 'scoped memory for tpu_custom_call.1']
    #allocation8 [shape = 'u8[65536]{0}', space=vmem, size = 0x10000, scoped, tag = 'input window, operand 3, single buffered']
    #allocation9 [shape = 'u8[65536]{0}', space=vmem, size = 0x10000, scoped, tag = 'input window, operand 5, single buffered']
    #allocation10 [shape = 's32[1]{0}', space=sflag, size = 0x4, scoped, tag = 'scoped memory for tpu_custom_call.1']
    #allocation11 [shape = 'u8[512]{0}', space=vmem, size = 0x400, scoped, tag = 'output window, operand 0, single buffered']
    %16 = vsyncpa [#allocation4], 0
    %17 = vsyncpa [#allocation7], 0
    %18 = vsyncpa [#allocation10], 0
    %19 = vsyncpa [#allocation5], 0
    // Predicated region
    $region2: #{tpu_custom_call.1} parent=1 // pred_check
      _
    $region3: #{tpu_custom_call.1} parent=1 // pred_check_branch
      %21 = sbr.rel (0) target = $region5
    $region4: #{tpu_custom_call.1} parent=1 // pred_region
      %23 = vsyncadd [#allocation4], 0
      %s24 = sshll.u32 %s0, 4
      %s25 = int_to_ptr.hbm [resolvable:$true] %s24
      %s26 = sshll.u32 [#allocation3], 4
      %s27 = int_to_ptr.vmem [resolvable:$true] %s26
      %32 = dma.hbm_to_vmem [thread:$0]  %s25, 256, %s27, [#allocation4], 128, 128, 8
    $region5: #{tpu_custom_call.1} parent=1 // pred_fallthru
      _
    // Predicated region
    $region6: #{tpu_custom_call.1} parent=1 // pred_check
      _
    $region7: #{tpu_custom_call.1} parent=1 // pred_check_branch
      %34 = sbr.rel (0) target = $region9
    $region8: #{tpu_custom_call.1} parent=1 // pred_region
      %36 = vsyncadd [#allocation7], 0
      %s37 = sshll.u32 %s1, 4
      %s38 = int_to_ptr.hbm [resolvable:$true] %s37
      %s39 = sshll.u32 [#allocation6], 4
      %s40 = int_to_ptr.vmem [resolvable:$true] %s39
      %45 = dma.hbm_to_vmem [thread:$0]  %s38, 640, %s40, [#allocation7], 64, 64, 4
    $region9: #{tpu_custom_call.1} parent=1 // pred_fallthru
      _
    // Predicated region
    $region10: #{tpu_custom_call.1} parent=1 // pred_check
      _
    $region11: #{tpu_custom_call.1} parent=1 // pred_check_branch
      %47 = sbr.rel (0) target = $region13
    $region12: #{tpu_custom_call.1} parent=1 // pred_region
      _
    $region13: #{tpu_custom_call.1} parent=1 // pred_fallthru
      _
    // Predicated region
    $region14: #{tpu_custom_call.1} parent=1 // pred_check
      _
    $region15: #{tpu_custom_call.1} parent=1 // pred_check_branch
      %49 = sbr.rel (0) target = $region17
    $region16: #{tpu_custom_call.1} parent=1 // pred_region
      %51 = vsyncadd [#allocation7], 0
      %s52 = sshll.u32 %s3, 4
      %s53 = int_to_ptr.hbm [resolvable:$true] %s52
      %s54 = sshll.u32 [#allocation8], 4
      %s55 = int_to_ptr.vmem [resolvable:$true] %s54
      %60 = dma.hbm_to_vmem [thread:$0]  %s53, 2048, %s55, [#allocation7], 128, 128, 8
    $region17: #{tpu_custom_call.1} parent=1 // pred_fallthru
      _
    // Predicated region
    $region18: #{tpu_custom_call.1} parent=1 // pred_check
      _
    $region19: #{tpu_custom_call.1} parent=1 // pred_check_branch
      %62 = sbr.rel (0) target = $region21
    $region20: #{tpu_custom_call.1} parent=1 // pred_region
      _
    $region21: #{tpu_custom_call.1} parent=1 // pred_fallthru
      _
    // Predicated region
    $region22: #{tpu_custom_call.1} parent=1 // pred_check
      _
    $region23: #{tpu_custom_call.1} parent=1 // pred_check_branch
      %64 = sbr.rel (0) target = $region25
    $region24: #{tpu_custom_call.1} parent=1 // pred_region
      %66 = vsyncadd [#allocation10], 0
      %s67 = sshll.u32 %s5, 4
      %s68 = int_to_ptr.hbm [resolvable:$true] %s67
      %s69 = sshll.u32 [#allocation9], 4
      %s70 = int_to_ptr.vmem [resolvable:$true] %s69
      %75 = dma.hbm_to_vmem [thread:$0]  %s68, 2048, %s70, [#allocation10], 64, 64, 4
    $region25: #{tpu_custom_call.1} parent=1 // pred_fallthru
      _
    // Predicated region
    $region26: #{tpu_custom_call.1} parent=1 // pred_check
      _
    $region27: #{tpu_custom_call.1} parent=1 // pred_check_branch
      %77 = sbr.rel (0) target = $region29
    $region28: #{tpu_custom_call.1} parent=1 // pred_region
      _
    $region29: #{tpu_custom_call.1} parent=1 // pred_fallthru
      _
    // Predicated region
    $region30: #{tpu_custom_call.1} parent=1 // pred_check
      _
    $region31: #{tpu_custom_call.1} parent=1 // pred_check_branch
      %79 = sbr.rel (0) target = $region33
    $region32: #{tpu_custom_call.1} parent=1 // pred_region
      _
    $region33: #{tpu_custom_call.1} parent=1 // pred_fallthru
      _
    // Predicated region
    $region34: #{tpu_custom_call.1} parent=1 // pred_check
      _
    $region35: #{tpu_custom_call.1} parent=1 // pred_check_branch
      %81 = sbr.rel (0) target = $region37
    $region36: #{tpu_custom_call.1} parent=1 // pred_region
      _
    $region37: #{tpu_custom_call.1} parent=1 // pred_fallthru
      _
    // Predicated region
    $region38: #{tpu_custom_call.1} parent=1 // pred_check
      _
    $region39: #{tpu_custom_call.1} parent=1 // pred_check_branch
      %83 = sbr.rel (0) target = $region41
    $region40: #{tpu_custom_call.1} parent=1 // pred_region
      %85 = dma.done [#allocation4], 256
    $region41: #{tpu_custom_call.1} parent=1 // pred_fallthru
      _
    // Predicated region
    $region42: #{tpu_custom_call.1} parent=1 // pred_check
      _
    $region43: #{tpu_custom_call.1} parent=1 // pred_check_branch
      %87 = sbr.rel (0) target = $region45
    $region44: #{tpu_custom_call.1} parent=1 // pred_region
      %89 = dma.done [#allocation7], 640
    $region45: #{tpu_custom_call.1} parent=1 // pred_fallthru
      _
    // Predicated region
    $region46: #{tpu_custom_call.1} parent=1 // pred_check
      _
    $region47: #{tpu_custom_call.1} parent=1 // pred_check_branch
      %91 = sbr.rel (0) target = $region49
    $region48: #{tpu_custom_call.1} parent=1 // pred_region
      %93 = dma.done [#allocation7], 2048
    $region49: #{tpu_custom_call.1} parent=1 // pred_fallthru
      _
    // Predicated region
    $region50: #{tpu_custom_call.1} parent=1 // pred_check
      _
    $region51: #{tpu_custom_call.1} parent=1 // pred_check_branch
      %95 = sbr.rel (0) target = $region53
    $region52: #{tpu_custom_call.1} parent=1 // pred_region
      %97 = dma.done [#allocation10], 2048
    $region53: #{tpu_custom_call.1} parent=1 // pred_fallthru
      _
    %v99 = vld [vmem:[#allocation3] sm:$0xff]
    %v100 = vld [vmem:[#allocation3 + $0x8] sm:$0xff]
    %v101 = vpack.c.bf16 %v100, %v99
    %v102 = vld [vmem:[#allocation6] sm:$0xf]
    %v103 = vld [vmem:[#allocation6 + $0x4] sm:$0xf]
    %v104 = vld [vmem:[#allocation6 + $0x8] sm:$0xf]
    %v105 = vld [vmem:[#allocation6 + $0xc] sm:$0xf]
    %v106 = vld [vmem:[#allocation6 + $0x10] sm:$0xf]
    %v107 = vld [vmem:[#allocation6 + $0x14] sm:$0xf]
    %v108 = vld [vmem:[#allocation6 + $0x18] sm:$0xf]
    %v109 = vld [vmem:[#allocation6 + $0x1c] sm:$0xf]
    %v110 = vld [vmem:[#allocation6 + $0x20] sm:$0xf]
    %v111 = vld [vmem:[#allocation6 + $0x24] sm:$0xf]
    %v112 = vld [vmem:[%s2] sm:$0x1]
    %v114 = vperm.slane %v112, 0
    %v126 = vunpack.c.l.b16 %v102
    %v127 = vunpack.c.l.b16 %v103
    %v128 = vunpack.c.l.b16 %v104
    %v129 = vunpack.c.l.b16 %v105
    %v130 = vunpack.c.l.b16 %v106
    %v131 = vunpack.c.l.b16 %v107
    %v132 = vunpack.c.l.b16 %v108
    %v133 = vunpack.c.l.b16 %v109
    %v134 = vunpack.c.l.b16 %v110
    %v135 = vunpack.c.l.b16 %v111
    %v136 = vpack.c.b16 %v127, %v126
    %v137 = vpack.c.b16 %v129, %v128
    %v138 = vpack.c.b16 %v131, %v130
    %v139 = vpack.c.b16 %v133, %v132
    %v140 = vpack.c.b16 %v135, %v134
    %vm146 = vcmask 654336
    %v148 = vsel %vm146, %v101, 0
    %150 = vmatpush.bf16.msra.mxu0 0
    %151 = vmatpush.bf16.msra.mxu0 0
    %152 = vmatpush.bf16.msra.mxu0 0
    %153 = vmatpush.bf16.msra.mxu0 %v140
    %154 = vmatpush.bf16.msra.mxu0 %v139
    %155 = vmatpush.bf16.msra.mxu0 %v138
    %156 = vmatpush.bf16.msra.mxu0 %v137
    %157 = vmatpush.bf16.msra.mxu0 %v136
    %158 = vmatmul.bf16.gmra.mxu0 %v148
    %v159 = vpop.f32.mrf.mxu0
    %v160 = vadd.f32 %v114, %v159
    %v161 = vpop.f32.mrf.mxu0
    %v162 = vadd.f32 %v114, %v161
    %163 = vdwg.mxu0
    %v164 = vmax.f32 %v160, 0.0
    %v165 = vmax.f32 %v162, 0.0
    %v166 = vpack.c.bf16 %v165, %v164
    %v167 = vld [vmem:[#allocation8] sm:$0xff]
    %v168 = vld [vmem:[#allocation8 + $0x8] sm:$0xff]
    %v169 = vld [vmem:[#allocation8 + $0x10] sm:$0xff]
    %v170 = vld [vmem:[#allocation8 + $0x18] sm:$0xff]
    %v171 = vld [vmem:[#allocation8 + $0x20] sm:$0xff]
    %v172 = vld [vmem:[#allocation8 + $0x28] sm:$0xff]
    %v173 = vld [vmem:[#allocation8 + $0x30] sm:$0xff]
    %v174 = vld [vmem:[#allocation8 + $0x38] sm:$0xff]
    %v175 = vld [vmem:[#allocation8 + $0x40] sm:$0xff]
    %v176 = vld [vmem:[#allocation8 + $0x48] sm:$0xff]
    %v177 = vld [vmem:[#allocation8 + $0x50] sm:$0xff]
    %v178 = vld [vmem:[#allocation8 + $0x58] sm:$0xff]
    %v179 = vld [vmem:[#allocation8 + $0x60] sm:$0xff]
    %v180 = vld [vmem:[#allocation8 + $0x68] sm:$0xff]
    %v181 = vld [vmem:[#allocation8 + $0x70] sm:$0xff]
    %v182 = vld [vmem:[#allocation8 + $0x78] sm:$0xff]
    %v183 = vld [vmem:[%s4] sm:$0x3]
    %v185 = vperm.slane %v183, 0
    %v186 = vperm.slane %v183, 1
    %v205 = vunpack.c.l.b16 %v167
    %v206 = vunpack.c.h.b16 %v167
    %v207 = vunpack.c.l.b16 %v168
    %v208 = vunpack.c.h.b16 %v168
    %v209 = vunpack.c.l.b16 %v169
    %v210 = vunpack.c.h.b16 %v169
    %v211 = vunpack.c.l.b16 %v170
    %v212 = vunpack.c.h.b16 %v170
    %v213 = vunpack.c.l.b16 %v171
    %v214 = vunpack.c.h.b16 %v171
    %v215 = vunpack.c.l.b16 %v172
    %v216 = vunpack.c.h.b16 %v172
    %v217 = vunpack.c.l.b16 %v173
    %v218 = vunpack.c.h.b16 %v173
    %v219 = vunpack.c.l.b16 %v174
    %v220 = vunpack.c.h.b16 %v174
    %v221 = vunpack.c.l.b16 %v175
    %v222 = vunpack.c.h.b16 %v175
    %v223 = vunpack.c.l.b16 %v176
    %v224 = vunpack.c.h.b16 %v176
    %v225 = vunpack.c.l.b16 %v177
    %v226 = vunpack.c.h.b16 %v177
    %v227 = vunpack.c.l.b16 %v178
    %v228 = vunpack.c.h.b16 %v178
    %v229 = vunpack.c.l.b16 %v179
    %v230 = vunpack.c.h.b16 %v179
    %v231 = vunpack.c.l.b16 %v180
    %v232 = vunpack.c.h.b16 %v180
    %v233 = vunpack.c.l.b16 %v181
    %v234 = vunpack.c.h.b16 %v181
    %v235 = vunpack.c.l.b16 %v182
    %v236 = vunpack.c.h.b16 %v182
    %v237 = vpack.c.b16 %v207, %v205
    %v238 = vpack.c.b16 %v208, %v206
    %v239 = vpack.c.b16 %v211, %v209
    %v240 = vpack.c.b16 %v212, %v210
    %v241 = vpack.c.b16 %v215, %v213
    %v242 = vpack.c.b16 %v216, %v214
    %v243 = vpack.c.b16 %v219, %v217
    %v244 = vpack.c.b16 %v220, %v218
    %v245 = vpack.c.b16 %v223, %v221
    %v246 = vpack.c.b16 %v224, %v222
    %v247 = vpack.c.b16 %v227, %v225
    %v248 = vpack.c.b16 %v228, %v226
    %v249 = vpack.c.b16 %v231, %v229
    %v250 = vpack.c.b16 %v232, %v230
    %v251 = vpack.c.b16 %v235, %v233
    %v252 = vpack.c.b16 %v236, %v234
    %269 = vmatpush.bf16.msra.mxu0 %v251
    %270 = vmatpush.bf16.msra.mxu0 %v249
    %271 = vmatpush.bf16.msra.mxu0 %v247
    %272 = vmatpush.bf16.msra.mxu0 %v245
    %273 = vmatpush.bf16.msra.mxu0 %v243
    %274 = vmatpush.bf16.msra.mxu0 %v241
    %275 = vmatpush.bf16.msra.mxu0 %v239
    %276 = vmatpush.bf16.msra.mxu0 %v237
    %277 = vmatmul.bf16.gmra.mxu0 %v166
    %v278 = vpop.f32.mrf.mxu0
    %v279 = vadd.f32 %v185, %v278
    %v280 = vpop.f32.mrf.mxu0
    %v281 = vadd.f32 %v185, %v280
    %282 = vdwg.mxu0
    %283 = vmatpush.bf16.msra.mxu0 %v252
    %284 = vmatpush.bf16.msra.mxu0 %v250
    %285 = vmatpush.bf16.msra.mxu0 %v248
    %286 = vmatpush.bf16.msra.mxu0 %v246
    %287 = vmatpush.bf16.msra.mxu0 %v244
    %288 = vmatpush.bf16.msra.mxu0 %v242
    %289 = vmatpush.bf16.msra.mxu0 %v240
    %290 = vmatpush.bf16.msra.mxu0 %v238
    %291 = vmatmul.bf16.gmra.mxu0 %v166
    %v292 = vpop.f32.mrf.mxu0
    %v293 = vadd.f32 %v186, %v292
    %v294 = vpop.f32.mrf.mxu0
    %v295 = vadd.f32 %v186, %v294
    %296 = vdwg.mxu0
    %v297 = vmax.f32 %v279, 0.0
    %v298 = vmax.f32 %v293, 0.0
    %v299 = vmax.f32 %v281, 0.0
    %v300 = vmax.f32 %v295, 0.0
    %v301 = vpack.c.bf16 %v299, %v297
    %v302 = vpack.c.bf16 %v300, %v298
    %v303 = vld [vmem:[#allocation9] sm:$0xf]
    %v304 = vld [vmem:[#allocation9 + $0x4] sm:$0xf]
    %v305 = vld [vmem:[#allocation9 + $0x8] sm:$0xf]
    %v306 = vld [vmem:[#allocation9 + $0xc] sm:$0xf]
    %v307 = vld [vmem:[#allocation9 + $0x10] sm:$0xf]
    %v308 = vld [vmem:[#allocation9 + $0x14] sm:$0xf]
    %v309 = vld [vmem:[#allocation9 + $0x18] sm:$0xf]
    %v310 = vld [vmem:[#allocation9 + $0x1c] sm:$0xf]
    %v311 = vld [vmem:[#allocation9 + $0x20] sm:$0xf]
    %v312 = vld [vmem:[#allocation9 + $0x24] sm:$0xf]
    %v313 = vld [vmem:[#allocation9 + $0x28] sm:$0xf]
    %v314 = vld [vmem:[#allocation9 + $0x2c] sm:$0xf]
    %v315 = vld [vmem:[#allocation9 + $0x30] sm:$0xf]
    %v316 = vld [vmem:[#allocation9 + $0x34] sm:$0xf]
    %v317 = vld [vmem:[#allocation9 + $0x38] sm:$0xf]
    %v318 = vld [vmem:[#allocation9 + $0x3c] sm:$0xf]
    %v319 = vld [vmem:[#allocation9 + $0x40] sm:$0xf]
    %v320 = vld [vmem:[#allocation9 + $0x44] sm:$0xf]
    %v321 = vld [vmem:[#allocation9 + $0x48] sm:$0xf]
    %v322 = vld [vmem:[#allocation9 + $0x4c] sm:$0xf]
    %v323 = vld [vmem:[#allocation9 + $0x50] sm:$0xf]
    %v324 = vld [vmem:[#allocation9 + $0x54] sm:$0xf]
    %v325 = vld [vmem:[#allocation9 + $0x58] sm:$0xf]
    %v326 = vld [vmem:[#allocation9 + $0x5c] sm:$0xf]
    %v327 = vld [vmem:[#allocation9 + $0x60] sm:$0xf]
    %v328 = vld [vmem:[#allocation9 + $0x64] sm:$0xf]
    %v329 = vld [vmem:[#allocation9 + $0x68] sm:$0xf]
    %v330 = vld [vmem:[#allocation9 + $0x6c] sm:$0xf]
    %v331 = vld [vmem:[#allocation9 + $0x70] sm:$0xf]
    %v332 = vld [vmem:[#allocation9 + $0x74] sm:$0xf]
    %v333 = vld [vmem:[#allocation9 + $0x78] sm:$0xf]
    %v334 = vld [vmem:[#allocation9 + $0x7c] sm:$0xf]
    %v335 = vld [vmem:[%s6] sm:$0x1]
    %v337 = vperm.slane %v335, 0
    %v371 = vunpack.c.l.b16 %v303
    %v372 = vunpack.c.l.b16 %v304
    %v373 = vunpack.c.l.b16 %v305
    %v374 = vunpack.c.l.b16 %v306
    %v375 = vunpack.c.l.b16 %v307
    %v376 = vunpack.c.l.b16 %v308
    %v377 = vunpack.c.l.b16 %v309
    %v378 = vunpack.c.l.b16 %v310
    %v379 = vunpack.c.l.b16 %v311
    %v380 = vunpack.c.l.b16 %v312
    %v381 = vunpack.c.l.b16 %v313
    %v382 = vunpack.c.l.b16 %v314
    %v383 = vunpack.c.l.b16 %v315
    %v384 = vunpack.c.l.b16 %v316
    %v385 = vunpack.c.l.b16 %v317
    %v386 = vunpack.c.l.b16 %v318
    %v387 = vunpack.c.l.b16 %v319
    %v388 = vunpack.c.l.b16 %v320
    %v389 = vunpack.c.l.b16 %v321
    %v390 = vunpack.c.l.b16 %v322
    %v391 = vunpack.c.l.b16 %v323
    %v392 = vunpack.c.l.b16 %v324
    %v393 = vunpack.c.l.b16 %v325
    %v394 = vunpack.c.l.b16 %v326
    %v395 = vunpack.c.l.b16 %v327
    %v396 = vunpack.c.l.b16 %v328
    %v397 = vunpack.c.l.b16 %v329
    %v398 = vunpack.c.l.b16 %v330
    %v399 = vunpack.c.l.b16 %v331
    %v400 = vunpack.c.l.b16 %v332
    %v401 = vunpack.c.l.b16 %v333
    %v402 = vunpack.c.l.b16 %v334
    %v403 = vpack.c.b16 %v372, %v371
    %v404 = vpack.c.b16 %v374, %v373
    %v405 = vpack.c.b16 %v376, %v375
    %v406 = vpack.c.b16 %v378, %v377
    %v407 = vpack.c.b16 %v380, %v379
    %v408 = vpack.c.b16 %v382, %v381
    %v409 = vpack.c.b16 %v384, %v383
    %v410 = vpack.c.b16 %v386, %v385
    %v411 = vpack.c.b16 %v388, %v387
    %v412 = vpack.c.b16 %v390, %v389
    %v413 = vpack.c.b16 %v392, %v391
    %v414 = vpack.c.b16 %v394, %v393
    %v415 = vpack.c.b16 %v396, %v395
    %v416 = vpack.c.b16 %v398, %v397
    %v417 = vpack.c.b16 %v400, %v399
    %v418 = vpack.c.b16 %v402, %v401
    %435 = vmatpush.bf16.msra.mxu0 %v410
    %436 = vmatpush.bf16.msra.mxu0 %v409
    %437 = vmatpush.bf16.msra.mxu0 %v408
    %438 = vmatpush.bf16.msra.mxu0 %v407
    %439 = vmatpush.bf16.msra.mxu0 %v406
    %440 = vmatpush.bf16.msra.mxu0 %v405
    %441 = vmatpush.bf16.msra.mxu0 %v404
    %442 = vmatpush.bf16.msra.mxu0 %v403
    %443 = vmatmul.bf16.gmra.mxu0 %v301
    %v444 = vpop.f32.mrf.mxu0
    %v445 = vadd.f32 %v337, %v444
    %v446 = vpop.f32.mrf.mxu0
    %v447 = vadd.f32 %v337, %v446
    %448 = vdwg.mxu0
    %449 = vmatpush.bf16.msra.mxu0 %v418
    %450 = vmatpush.bf16.msra.mxu0 %v417
    %451 = vmatpush.bf16.msra.mxu0 %v416
    %452 = vmatpush.bf16.msra.mxu0 %v415
    %453 = vmatpush.bf16.msra.mxu0 %v414
    %454 = vmatpush.bf16.msra.mxu0 %v413
    %455 = vmatpush.bf16.msra.mxu0 %v412
    %456 = vmatpush.bf16.msra.mxu0 %v411
    %457 = vmatmul.bf16.gmra.mxu0 %v302
    %v458 = vpop.f32.mrf.mxu0
    %v459 = vadd.f32 %v445, %v458
    %v460 = vpop.f32.mrf.mxu0
    %v461 = vadd.f32 %v447, %v460
    %462 = vdwg.mxu0
    %v463 = vmax.f32 %v459, 0.0
    %v464 = vmax.f32 %v461, 0.0
    %v465 = vpack.c.bf16 %v464, %v463
    %v466 = vld [vmem:[%s7] sm:$0x1]
    %v467 = vld [vmem:[#allocation2] sm:$0x1]
    %469 = vset.pattern.permute.xlu0 0
    %470 = vperm.xlu0 %469, %v467
    %v471 = vpop.permute.xlu0 %470
    %v473 = vperm.slane %v471, 0
    %474 = vmatpush.bf16.xpose.msra.mxu0 0
    %475 = vmatpush.bf16.xpose.msra.mxu0 0
    %476 = vmatpush.bf16.xpose.msra.mxu0 0
    %477 = vmatpush.bf16.xpose.msra.mxu0 0
    %478 = vmatpush.bf16.xpose.msra.mxu0 0
    %479 = vmatpush.bf16.xpose.msra.mxu0 0
    %480 = vmatpush.bf16.xpose.msra.mxu0 0
    %481 = vmatpush.bf16.xpose.msra.mxu0 %v465
    %482 = vmatmul.bf16.gmra.mxu0 %v466
    %v483 = vpop.f32.mrf.mxu0
    %v484 = vadd.f32 %v473, %v483
    %v485 = vpop.f32.mrf.mxu0
    %486 = vdwg.mxu0
    %vm487 = vcmask 122880
    %488 = vst.msk [vmem:[#allocation11] sm:$0x1] %vm487, %v484
    // Predicated region
    $region54: #{tpu_custom_call.1} parent=1 // pred_check
      _
    $region55: #{tpu_custom_call.1} parent=1 // pred_check_branch
      %490 = sbr.rel (0) target = $region57
    $region56: #{tpu_custom_call.1} parent=1 // pred_region
      %492 = vsyncadd [#allocation5], 0
      %s494 = sshll.u32 [#allocation11], 4
      %s495 = int_to_ptr.vmem [resolvable:$true] %s494
      %s496 = sshll.u32 %s9, 4
      %s497 = int_to_ptr.hbm [resolvable:$true] %s496
      %499 = dma.vmem_to_hbm [thread:$0]  %s495, 16, %s497, [#allocation5]
    $region57: #{tpu_custom_call.1} parent=1 // pred_fallthru
      _
    // Predicated region
    $region58: #{tpu_custom_call.1} parent=1 // pred_check
      _
    $region59: #{tpu_custom_call.1} parent=1 // pred_check_branch
      %501 = sbr.rel (0) target = $region61
    $region60: #{tpu_custom_call.1} parent=1 // pred_region
      %503 = dma.done [#allocation5], 16
    $region61: #{tpu_custom_call.1} parent=1 // pred_fallthru
      _
    %504 = vsyncpa [#allocation4], 1
    %505 = vsyncpa [#allocation7], 1
    %506 = vsyncpa [#allocation10], 1
    %507 = vsyncpa [#allocation5], 1

</llo_original>
